<compile_context>
chip_gen: v5e
topology: v5e:2x2
jax: 0.10.0
libtpu: 0.0.40
codegen_flags: <defaults>
</compile_context>

<pallas_src>
import jax
import jax.numpy as jnp
from jax.experimental import pallas as pl
from jax.experimental.pallas import tpu as pltpu

HIDDEN = 64
LANE = 128


def _round_up(n, m):
    return ((n + m - 1) // m) * m


def _critic_kernel(x_ref, w1t_ref, b1_ref, w2t_ref, b2_ref, w3_ref, b3_ref, o_ref):
    # Batch-on-lanes orientation: activations are (64, TB).
    #   x_ref : (D, TB)   bf16  -- moves per grid step
    #   w1t   : (64, D)   bf16  -- VMEM-resident
    #   w2t   : (64, 64)  bf16  -- VMEM-resident
    #   b1,b2 : (64, 1)   f32
    #   w3    : (64, 1)   f32   -- used on the VPU, not the MXU
    #   b3    : (1, 1)    f32
    #   o_ref : (1, TB)   f32   -- lane-dense output row

    # Layer 1: MXU, bf16 inputs, f32 accumulation; bias + tanh in f32.
    h1 = jnp.dot(w1t_ref[...], x_ref[...], preferred_element_type=jnp.float32)
    h1 = jnp.tanh(h1 + b1_ref[...])

    # Layer 2: MXU, bf16 inputs, f32 accumulation; bias + tanh in f32.
    h2 = jnp.dot(w2t_ref[...], h1.astype(jnp.bfloat16),
                 preferred_element_type=jnp.float32)
    h2 = jnp.tanh(h2 + b2_ref[...])

    # Layer 3 (64 -> 1): an M=1 matmul would waste a full MXU push, so do it on
    # the VPU/XLU: broadcast-multiply by the w3 column + sublane reduce.
    out = jnp.sum(h2 * w3_ref[...], axis=0, keepdims=True) + b3_ref[...]
    o_ref[...] = out.astype(o_ref.dtype)


def critic_forward(x, params, *, block_b=2048, min_grid_steps=8):
    """x: (B, state_dim) f32. params: dict of w1,b1,w2,b2,w3,b3. Returns (B, 1) f32."""
    B, D = x.shape

    # Batch tile on the lane axis: multiple of 128, large enough to amortize the
    # ~0.35us per-step pipeline overhead, capped so (a) the grid keeps several
    # steps for v7x's two TensorCores and (b) the last tile is not mostly padding.
    tb_cap = max(LANE, _round_up(pl.cdiv(B, min_grid_steps), LANE))
    tb_max = max(LANE, min(_round_up(block_b, LANE), tb_cap))
    num_tiles = pl.cdiv(B, tb_max)
    TB = _round_up(pl.cdiv(B, num_tiles), LANE)
    padded_B = num_tiles * TB

    # Single wrapper prep pass: pad + transpose + cast x -> (D, padded_B) bf16.
    xt = jnp.pad(x, ((0, padded_B - B), (0, 0))).T.astype(jnp.bfloat16)

    w1t = params["w1"].T.astype(jnp.bfloat16)   # (64, D)
    w2t = params["w2"].T.astype(jnp.bfloat16)   # (64, 64)
    b1 = params["b1"].reshape(HIDDEN, 1)        # (64, 1) f32
    b2 = params["b2"].reshape(HIDDEN, 1)        # (64, 1) f32
    w3 = params["w3"].reshape(HIDDEN, 1)        # (64, 1) f32 (VPU column)
    b3 = params["b3"].reshape(1, 1)             # (1, 1)  f32

    out = pl.pallas_call(
        _critic_kernel,
        out_shape=jax.ShapeDtypeStruct((1, padded_B), jnp.float32),
        grid_spec=pltpu.PrefetchScalarGridSpec(
            num_scalar_prefetch=0,
            grid=(num_tiles,),
            in_specs=[
                pl.BlockSpec((D, TB), lambda i: (0, i)),           # x^T tile: moves
                pl.BlockSpec((HIDDEN, D), lambda i: (0, 0)),       # w1^T: resident
                pl.BlockSpec((HIDDEN, 1), lambda i: (0, 0)),       # b1
                pl.BlockSpec((HIDDEN, HIDDEN), lambda i: (0, 0)),  # w2^T: resident
                pl.BlockSpec((HIDDEN, 1), lambda i: (0, 0)),       # b2
                pl.BlockSpec((HIDDEN, 1), lambda i: (0, 0)),       # w3 column
                pl.BlockSpec((1, 1), lambda i: (0, 0)),            # b3
            ],
            out_specs=pl.BlockSpec((1, TB), lambda i: (0, i)),     # lane-dense row
        ),
        compiler_params=pltpu.CompilerParams(
            dimension_semantics=("parallel",),
            vmem_limit_bytes=32 * 1024 * 1024,
        ),
        cost_estimate=pl.CostEstimate(
            flops=2 * padded_B * (D * HIDDEN + HIDDEN * HIDDEN + HIDDEN),
            transcendentals=2 * HIDDEN * padded_B,
            bytes_accessed=(2 * padded_B * D                        # bf16 x^T
                            + 4 * padded_B                          # f32 out row
                            + 2 * (D * HIDDEN + HIDDEN * HIDDEN)    # bf16 weights
                            + 4 * (3 * HIDDEN + 1)),                # f32 biases + w3
        ),
    )(xt, w1t, b1, w2t, b2, w3, b3)

    # (1, padded_B) -> (B, 1), dropping the zero-padded batch columns.
    return out[0, :B, None]


def init_critic_params(key, state_dim):
    """Deterministic synthetic init (shapes match the PyTorch module)."""
    ks = jax.random.split(key, 6)
    scale1 = 1.0 / jnp.sqrt(state_dim)
    scale2 = 1.0 / jnp.sqrt(HIDDEN)
    return {
        "w1": jax.random.uniform(ks[0], (state_dim, HIDDEN), jnp.float32, -scale1, scale1),
        "b1": jax.random.uniform(ks[1], (1, HIDDEN), jnp.float32, -scale1, scale1),
        "w2": jax.random.uniform(ks[2], (HIDDEN, HIDDEN), jnp.float32, -scale2, scale2),
        "b2": jax.random.uniform(ks[3], (1, HIDDEN), jnp.float32, -scale2, scale2),
        "w3": jax.random.uniform(ks[4], (1, HIDDEN), jnp.float32, -scale2, scale2),
        "b3": jax.random.uniform(ks[5], (1, 1), jnp.float32, -scale2, scale2),
    }


def critic_reference(x, params):
    """Pure-JAX f32 reference matching the PyTorch forward."""
    h1 = jnp.tanh(x @ params["w1"] + params["b1"])
    h2 = jnp.tanh(h1 @ params["w2"] + params["b2"])
    return h2 @ params["w3"].T + params["b3"]


if __name__ == "__main__":
    key = jax.random.PRNGKey(0)
    k_param, k_x = jax.random.split(key)

    batch, state_dim = 8, 32
    params = init_critic_params(k_param, state_dim)
    x = jax.random.normal(k_x, (batch, state_dim), jnp.float32)

    out = jax.block_until_ready(critic_forward(x, params))
    ref = critic_reference(x, params)
    assert out.shape == (batch, 1), out.shape
    # bf16 MXU inputs (f32 accumulation) -> loose-ish tolerance vs f32 reference.
    assert jnp.allclose(out, ref, atol=5e-2, rtol=5e-2), (out, ref)

    # Multi-tile path: grid > 1, weight residency, remainder padding, lane-dense out.
    x2 = jax.random.normal(jax.random.PRNGKey(1), (300, state_dim), jnp.float32)
    out2 = jax.block_until_ready(critic_forward(x2, params))
    ref2 = critic_reference(x2, params)
    assert out2.shape == (300, 1), out2.shape
    assert jnp.allclose(out2, ref2, atol=5e-2, rtol=5e-2), (out2, ref2)

    print("KERNEL_OK")
</pallas_src>

<mosaic_0001>
module attributes {stable_mosaic.version = 11 : i64} {
  func.func @_critic_kernel(%arg0: i32, %arg1: memref<32x128xbf16, #tpu.memory_space<vmem>>, %arg2: memref<64x32xbf16, #tpu.memory_space<vmem>>, %arg3: memref<64x1xf32, #tpu.memory_space<vmem>>, %arg4: memref<64x64xbf16, #tpu.memory_space<vmem>>, %arg5: memref<64x1xf32, #tpu.memory_space<vmem>>, %arg6: memref<64x1xf32, #tpu.memory_space<vmem>>, %arg7: memref<1x1xf32, #tpu.memory_space<vmem>>, %arg8: memref<1x128xf32, #tpu.memory_space<vmem>>) attributes {dimension_semantics = [#tpu.dimension_semantics<parallel>], iteration_bounds = array<i64: 1>, scalar_prefetch = 0 : i64, scratch_operands = 0 : i64, tpu.core_type = #tpu.core_type<tc>, window_params = [{transform_indices = @transform_0, window_bounds = array<i64: 32, 128>}, {pipeline_mode = #tpu.pipeline_mode<synchronous>, transform_indices = @transform_1, window_bounds = array<i64: 64, 32>}, {pipeline_mode = #tpu.pipeline_mode<synchronous>, transform_indices = @transform_2, window_bounds = array<i64: 64, 1>}, {pipeline_mode = #tpu.pipeline_mode<synchronous>, transform_indices = @transform_3, window_bounds = array<i64: 64, 64>}, {pipeline_mode = #tpu.pipeline_mode<synchronous>, transform_indices = @transform_4, window_bounds = array<i64: 64, 1>}, {pipeline_mode = #tpu.pipeline_mode<synchronous>, transform_indices = @transform_5, window_bounds = array<i64: 64, 1>}, {pipeline_mode = #tpu.pipeline_mode<synchronous>, transform_indices = @transform_6, window_bounds = array<i64: 1, 1>}, {transform_indices = @transform_7, window_bounds = array<i64: 1, 128>}]} {
    %c0 = arith.constant 0 : index
    %c0_0 = arith.constant 0 : index
    %0 = vector.load %arg2[%c0, %c0_0] : memref<64x32xbf16, #tpu.memory_space<vmem>>, vector<64x32xbf16>
    %c0_1 = arith.constant 0 : index
    %c0_2 = arith.constant 0 : index
    %1 = vector.load %arg1[%c0_1, %c0_2] : memref<32x128xbf16, #tpu.memory_space<vmem>>, vector<32x128xbf16>
    %cst = arith.constant dense<0.000000e+00> : vector<64x128xf32>
    %2 = tpu.matmul %0, %1, %cst {dimension_numbers = #tpu.dot_dimension_numbers<[1], [0], [0], [1], [0, 0, 1, 1], [], []>} : vector<64x32xbf16>, vector<32x128xbf16>, vector<64x128xf32> -> vector<64x128xf32>
    %c0_3 = arith.constant 0 : index
    %c0_4 = arith.constant 0 : index
    %3 = vector.load %arg3[%c0_3, %c0_4] : memref<64x1xf32, #tpu.memory_space<vmem>>, vector<64x1xf32>
    %4 = vector.broadcast %3 : vector<64x1xf32> to vector<64x128xf32>
    %5 = arith.addf %2, %4 : vector<64x128xf32>
    %6 = math.tanh %5 : vector<64x128xf32>
    %c0_5 = arith.constant 0 : index
    %c0_6 = arith.constant 0 : index
    %7 = vector.load %arg4[%c0_5, %c0_6] : memref<64x64xbf16, #tpu.memory_space<vmem>>, vector<64x64xbf16>
    %8 = arith.truncf %6 : vector<64x128xf32> to vector<64x128xbf16>
    %cst_7 = arith.constant dense<0.000000e+00> : vector<64x128xf32>
    %9 = tpu.matmul %7, %8, %cst_7 {dimension_numbers = #tpu.dot_dimension_numbers<[1], [0], [0], [1], [0, 0, 1, 1], [], []>} : vector<64x64xbf16>, vector<64x128xbf16>, vector<64x128xf32> -> vector<64x128xf32>
    %c0_8 = arith.constant 0 : index
    %c0_9 = arith.constant 0 : index
    %10 = vector.load %arg5[%c0_8, %c0_9] : memref<64x1xf32, #tpu.memory_space<vmem>>, vector<64x1xf32>
    %11 = vector.broadcast %10 : vector<64x1xf32> to vector<64x128xf32>
    %12 = arith.addf %9, %11 : vector<64x128xf32>
    %13 = math.tanh %12 : vector<64x128xf32>
    %c0_10 = arith.constant 0 : index
    %c0_11 = arith.constant 0 : index
    %14 = vector.load %arg6[%c0_10, %c0_11] : memref<64x1xf32, #tpu.memory_space<vmem>>, vector<64x1xf32>
    %15 = vector.broadcast %14 : vector<64x1xf32> to vector<64x128xf32>
    %16 = arith.mulf %13, %15 : vector<64x128xf32>
    %cst_12 = arith.constant dense<0.000000e+00> : vector<128xf32>
    %17 = vector.multi_reduction <add>, %16, %cst_12 [0] : vector<64x128xf32> to vector<128xf32>
    %18 = vector.shape_cast %17 : vector<128xf32> to vector<1x128xf32>
    %c0_13 = arith.constant 0 : index
    %c0_14 = arith.constant 0 : index
    %19 = vector.load %arg7[%c0_13, %c0_14] : memref<1x1xf32, #tpu.memory_space<vmem>>, vector<1x1xf32>
    %20 = vector.broadcast %19 : vector<1x1xf32> to vector<1x128xf32>
    %21 = arith.addf %18, %20 : vector<1x128xf32>
    %c0_15 = arith.constant 0 : index
    %c0_16 = arith.constant 0 : index
    %22 = vector.load %arg8[%c0_15, %c0_16] : memref<1x128xf32, #tpu.memory_space<vmem>>, vector<1x128xf32>
    tpu.vector_store %arg8[%c0_15, %c0_16], %21 {strides = array<i32>} : memref<1x128xf32, #tpu.memory_space<vmem>>, vector<1x128xf32>,
    return
  }
  func.func @transform_0(%arg0: i32) -> (i32, i32) {
    %c0_i32 = arith.constant 0 : i32
    %c0_i32_0 = arith.constant 0 : i32
    return %c0_i32, %arg0 : i32, i32
  }
  func.func @transform_1(%arg0: i32) -> (i32, i32) {
    %c0_i32 = arith.constant 0 : i32
    %c0_i32_0 = arith.constant 0 : i32
    %c0_i32_1 = arith.constant 0 : i32
    return %c0_i32, %c0_i32_0 : i32, i32
  }
  func.func @transform_2(%arg0: i32) -> (i32, i32) {
    %c0_i32 = arith.constant 0 : i32
    %c0_i32_0 = arith.constant 0 : i32
    %c0_i32_1 = arith.constant 0 : i32
    return %c0_i32, %c0_i32_0 : i32, i32
  }
  func.func @transform_3(%arg0: i32) -> (i32, i32) {
    %c0_i32 = arith.constant 0 : i32
    %c0_i32_0 = arith.constant 0 : i32
    %c0_i32_1 = arith.constant 0 : i32
    return %c0_i32, %c0_i32_0 : i32, i32
  }
  func.func @transform_4(%arg0: i32) -> (i32, i32) {
    %c0_i32 = arith.constant 0 : i32
    %c0_i32_0 = arith.constant 0 : i32
    %c0_i32_1 = arith.constant 0 : i32
    return %c0_i32, %c0_i32_0 : i32, i32
  }
  func.func @transform_5(%arg0: i32) -> (i32, i32) {
    %c0_i32 = arith.constant 0 : i32
    %c0_i32_0 = arith.constant 0 : i32
    %c0_i32_1 = arith.constant 0 : i32
    return %c0_i32, %c0_i32_0 : i32, i32
  }
  func.func @transform_6(%arg0: i32) -> (i32, i32) {
    %c0_i32 = arith.constant 0 : i32
    %c0_i32_0 = arith.constant 0 : i32
    %c0_i32_1 = arith.constant 0 : i32
    return %c0_i32, %c0_i32_0 : i32, i32
  }
  func.func @transform_7(%arg0: i32) -> (i32, i32) {
    %c0_i32 = arith.constant 0 : i32
    %c0_i32_0 = arith.constant 0 : i32
    return %c0_i32, %arg0 : i32, i32
  }
}

</mosaic_0001>

<llo_original>
// kernel: tpu_custom_call.1
$region0: #{tpu_custom_call.1}
  #allocation0 [shape = 'u32[]', space=smem, size = 0x4, offset = 0x4, fixed_abs, tag = 'smem constant byte address 0x4 - core index']
  #allocation1 [shape = 'u32[72,128]{1,0:T(1,128)}', space=vmem, size = 0x9000, scoped, tag = 'internal scratch']
  #allocation2 [shape = 'f32[1,1]{1,0:T(1,128)S(1)}', space=vmem, size = 0x200, scoped, tag = 'scoped memory for tpu_custom_call.1']
  %s0 = inlined_call_operand.vmem [shape: bf16[32,128], index: 0, kind: input, shape index: {}]
  %s1 = inlined_call_operand.vmem [shape: bf16[64,32], index: 1, kind: input, shape index: {}]
  %s2 = inlined_call_operand.vmem [shape: f32[64,1], index: 2, kind: input, shape index: {}]
  %s3 = inlined_call_operand.vmem [shape: bf16[64,64], index: 3, kind: input, shape index: {}]
  %s4 = inlined_call_operand.vmem [shape: f32[64,1], index: 4, kind: input, shape index: {}]
  %s5 = inlined_call_operand.vmem [shape: f32[64,1], index: 5, kind: input, shape index: {}]
  %s6 = inlined_call_operand.<no memory space> [shape: f32[1,1], index: 6, kind: input, shape index: {}]
  %s7 = inlined_call_operand.hbm [shape: f32[1,128], index: 7, kind: output, shape index: {}]
  %s8 = sld [smem:[#allocation0]]
  $region38: #{tpu_custom_call.1} parent=0
    _
  %s10 = ssub.s32 1, %s8
  %s11 = scalar_select 0, %s10, %s8
  %v12 = vstv %s6
  %13 = vst [vmem:[#allocation2] sm:$0x1] %v12
  $region1: #{tpu_custom_call.1} parent=0
    #allocation3 [shape = 'u8[512]{0}', space=vmem, size = 0x400, scoped, tag = 'output window, operand 0, single buffered']
    #allocation4 [shape = 's32[1]{0}', space=sflag, size = 0x4, scoped, tag = 'scoped memory for tpu_custom_call.1']
    %14 = vsyncpa [#allocation4], 0
    // Predicated region
    $region2: #{tpu_custom_call.1} parent=1 // pred_check
      _
    $region3: #{tpu_custom_call.1} parent=1 // pred_check_branch
      %16 = sbr.rel (0) target = $region5
    $region4: #{tpu_custom_call.1} parent=1 // pred_region
      _
    $region5: #{tpu_custom_call.1} parent=1 // pred_fallthru
      _
    // Predicated region
    $region6: #{tpu_custom_call.1} parent=1 // pred_check
      _
    $region7: #{tpu_custom_call.1} parent=1 // pred_check_branch
      %18 = sbr.rel (0) target = $region9
    $region8: #{tpu_custom_call.1} parent=1 // pred_region
      _
    $region9: #{tpu_custom_call.1} parent=1 // pred_fallthru
      _
    // Predicated region
    $region10: #{tpu_custom_call.1} parent=1 // pred_check
      _
    $region11: #{tpu_custom_call.1} parent=1 // pred_check_branch
      %20 = sbr.rel (0) target = $region13
    $region12: #{tpu_custom_call.1} parent=1 // pred_region
      _
    $region13: #{tpu_custom_call.1} parent=1 // pred_fallthru
      _
    // Predicated region
    $region14: #{tpu_custom_call.1} parent=1 // pred_check
      _
    $region15: #{tpu_custom_call.1} parent=1 // pred_check_branch
      %22 = sbr.rel (0) target = $region17
    $region16: #{tpu_custom_call.1} parent=1 // pred_region
      _
    $region17: #{tpu_custom_call.1} parent=1 // pred_fallthru
      _
    // Predicated region
    $region18: #{tpu_custom_call.1} parent=1 // pred_check
      _
    $region19: #{tpu_custom_call.1} parent=1 // pred_check_branch
      %24 = sbr.rel (0) target = $region21
    $region20: #{tpu_custom_call.1} parent=1 // pred_region
      _
    $region21: #{tpu_custom_call.1} parent=1 // pred_fallthru
      _
    // Predicated region
    $region22: #{tpu_custom_call.1} parent=1 // pred_check
      _
    $region23: #{tpu_custom_call.1} parent=1 // pred_check_branch
      %26 = sbr.rel (0) target = $region25
    $region24: #{tpu_custom_call.1} parent=1 // pred_region
      _
    $region25: #{tpu_custom_call.1} parent=1 // pred_fallthru
      _
    // Predicated region
    $region26: #{tpu_custom_call.1} parent=1 // pred_check
      _
    $region27: #{tpu_custom_call.1} parent=1 // pred_check_branch
      %28 = sbr.rel (0) target = $region29
    $region28: #{tpu_custom_call.1} parent=1 // pred_region
      _
    $region29: #{tpu_custom_call.1} parent=1 // pred_fallthru
      _
    %v30 = vld [vmem:[%s1] sm:$0xf]
    %v31 = vld [vmem:[%s1 + $0x4] sm:$0xf]
    %v32 = vld [vmem:[%s1 + $0x8] sm:$0xf]
    %v33 = vld [vmem:[%s1 + $0xc] sm:$0xf]
    %v34 = vld [vmem:[%s1 + $0x10] sm:$0xf]
    %v35 = vld [vmem:[%s1 + $0x14] sm:$0xf]
    %v36 = vld [vmem:[%s1 + $0x18] sm:$0xf]
    %v37 = vld [vmem:[%s1 + $0x1c] sm:$0xf]
    %v38 = vld [vmem:[%s0] sm:$0xf]
    %v39 = vld [vmem:[%s0 + $0x4] sm:$0xf]
    %v40 = vld [vmem:[%s0 + $0x8] sm:$0xf]
    %v41 = vld [vmem:[%s0 + $0xc] sm:$0xf]
    %v42 = vld [vmem:[%s2] sm:$0xff]
    %v43 = vld [vmem:[%s2 + $0x8] sm:$0xff]
    %v44 = vld [vmem:[%s2 + $0x10] sm:$0xff]
    %v45 = vld [vmem:[%s2 + $0x18] sm:$0xff]
    %v46 = vld [vmem:[%s2 + $0x20] sm:$0xff]
    %v47 = vld [vmem:[%s2 + $0x28] sm:$0xff]
    %v48 = vld [vmem:[%s2 + $0x30] sm:$0xff]
    %v49 = vld [vmem:[%s2 + $0x38] sm:$0xff]
    %51 = vset.pattern.permute.xlu0 0
    %52 = vperm.xlu0 %51, %v42
    %v53 = vpop.permute.xlu0 %52
    %56 = vset.pattern.permute.xlu0 0
    %57 = vperm.xlu0 %56, %v43
    %v58 = vpop.permute.xlu0 %57
    %61 = vset.pattern.permute.xlu0 0
    %62 = vperm.xlu0 %61, %v44
    %v63 = vpop.permute.xlu0 %62
    %66 = vset.pattern.permute.xlu0 0
    %67 = vperm.xlu0 %66, %v45
    %v68 = vpop.permute.xlu0 %67
    %71 = vset.pattern.permute.xlu0 0
    %72 = vperm.xlu0 %71, %v46
    %v73 = vpop.permute.xlu0 %72
    %76 = vset.pattern.permute.xlu0 0
    %77 = vperm.xlu0 %76, %v47
    %v78 = vpop.permute.xlu0 %77
    %81 = vset.pattern.permute.xlu0 0
    %82 = vperm.xlu0 %81, %v48
    %v83 = vpop.permute.xlu0 %82
    %86 = vset.pattern.permute.xlu0 0
    %87 = vperm.xlu0 %86, %v49
    %v88 = vpop.permute.xlu0 %87
    %v98 = vunpack.c.l.b16 %v30
    %v99 = vunpack.c.l.b16 %v31
    %v100 = vunpack.c.l.b16 %v32
    %v101 = vunpack.c.l.b16 %v33
    %v102 = vunpack.c.l.b16 %v34
    %v103 = vunpack.c.l.b16 %v35
    %v104 = vunpack.c.l.b16 %v36
    %v105 = vunpack.c.l.b16 %v37
    %v106 = vpack.c.b16 %v99, %v98
    %v107 = vpack.c.b16 %v101, %v100
    %v108 = vpack.c.b16 %v103, %v102
    %v109 = vpack.c.b16 %v105, %v104
    %v114 = vunpack.c.l.b16 %v38
    %v115 = vunpack.c.l.b16 %v39
    %v116 = vunpack.c.l.b16 %v40
    %v117 = vunpack.c.l.b16 %v41
    %v118 = vpack.c.b16 %v115, %v114
    %v119 = vpack.c.b16 %v117, %v116
    %vm122 = vcmask 261120
    %v124 = vsel %vm122, %v106, 0
    %v127 = vsel %vm122, %v107, 0
    %v130 = vsel %vm122, %v108, 0
    %v133 = vsel %vm122, %v109, 0
    %135 = vmatpush.bf16.msra.mxu0 0
    %136 = vmatpush.bf16.msra.mxu0 0
    %137 = vmatpush.bf16.msra.mxu0 0
    %138 = vmatpush.bf16.msra.mxu0 0
    %139 = vmatpush.bf16.msra.mxu0 0
    %140 = vmatpush.bf16.msra.mxu0 0
    %141 = vmatpush.bf16.msra.mxu0 %v119
    %142 = vmatpush.bf16.msra.mxu0 %v118
    %143 = vmatmul.bf16.gmra.mxu0 %v124
    %v144 = vpop.f32.mrf.mxu0
    %v145 = vadd.f32 %v53, %v144
    %v146 = vpop.f32.mrf.mxu0
    %v147 = vadd.f32 %v58, %v146
    %148 = vmatmul.bf16.gmra.mxu0 %v127
    %v149 = vpop.f32.mrf.mxu0
    %v150 = vadd.f32 %v63, %v149
    %v151 = vpop.f32.mrf.mxu0
    %v152 = vadd.f32 %v68, %v151
    %153 = vmatmul.bf16.gmra.mxu0 %v130
    %v154 = vpop.f32.mrf.mxu0
    %v155 = vadd.f32 %v73, %v154
    %v156 = vpop.f32.mrf.mxu0
    %v157 = vadd.f32 %v78, %v156
    %158 = vmatmul.bf16.gmra.mxu0 %v133
    %v159 = vpop.f32.mrf.mxu0
    %v160 = vadd.f32 %v83, %v159
    %v161 = vpop.f32.mrf.mxu0
    %v162 = vadd.f32 %v88, %v161
    %163 = vdwg.mxu0
    %v164 = vtanh.pop %v145
    %v165 = vtanh.pop %v147
    %v166 = vtanh.pop %v150
    %v167 = vtanh.pop %v152
    %v168 = vtanh.pop %v155
    %v169 = vtanh.pop %v157
    %v170 = vtanh.pop %v160
    %v171 = vtanh.pop %v162
    %v172 = vld [vmem:[%s3] sm:$0xf]
    %v173 = vld [vmem:[%s3 + $0x4] sm:$0xf]
    %v174 = vld [vmem:[%s3 + $0x8] sm:$0xf]
    %v175 = vld [vmem:[%s3 + $0xc] sm:$0xf]
    %v176 = vld [vmem:[%s3 + $0x10] sm:$0xf]
    %v177 = vld [vmem:[%s3 + $0x14] sm:$0xf]
    %v178 = vld [vmem:[%s3 + $0x18] sm:$0xf]
    %v179 = vld [vmem:[%s3 + $0x1c] sm:$0xf]
    %v180 = vpack.c.bf16 %v165, %v164
    %v181 = vpack.c.bf16 %v167, %v166
    %v182 = vpack.c.bf16 %v169, %v168
    %v183 = vpack.c.bf16 %v171, %v170
    %v184 = vld [vmem:[%s4] sm:$0xff]
    %v185 = vld [vmem:[%s4 + $0x8] sm:$0xff]
    %v186 = vld [vmem:[%s4 + $0x10] sm:$0xff]
    %v187 = vld [vmem:[%s4 + $0x18] sm:$0xff]
    %v188 = vld [vmem:[%s4 + $0x20] sm:$0xff]
    %v189 = vld [vmem:[%s4 + $0x28] sm:$0xff]
    %v190 = vld [vmem:[%s4 + $0x30] sm:$0xff]
    %v191 = vld [vmem:[%s4 + $0x38] sm:$0xff]
    %193 = vset.pattern.permute.xlu0 0
    %194 = vperm.xlu0 %193, %v184
    %v195 = vpop.permute.xlu0 %194
    %198 = vset.pattern.permute.xlu0 0
    %199 = vperm.xlu0 %198, %v185
    %v200 = vpop.permute.xlu0 %199
    %203 = vset.pattern.permute.xlu0 0
    %204 = vperm.xlu0 %203, %v186
    %v205 = vpop.permute.xlu0 %204
    %208 = vset.pattern.permute.xlu0 0
    %209 = vperm.xlu0 %208, %v187
    %v210 = vpop.permute.xlu0 %209
    %213 = vset.pattern.permute.xlu0 0
    %214 = vperm.xlu0 %213, %v188
    %v215 = vpop.permute.xlu0 %214
    %218 = vset.pattern.permute.xlu0 0
    %219 = vperm.xlu0 %218, %v189
    %v220 = vpop.permute.xlu0 %219
    %223 = vset.pattern.permute.xlu0 0
    %224 = vperm.xlu0 %223, %v190
    %v225 = vpop.permute.xlu0 %224
    %228 = vset.pattern.permute.xlu0 0
    %229 = vperm.xlu0 %228, %v191
    %v230 = vpop.permute.xlu0 %229
    %v240 = vunpack.c.l.b16 %v172
    %v241 = vunpack.c.l.b16 %v173
    %v242 = vunpack.c.l.b16 %v174
    %v243 = vunpack.c.l.b16 %v175
    %v244 = vunpack.c.l.b16 %v176
    %v245 = vunpack.c.l.b16 %v177
    %v246 = vunpack.c.l.b16 %v178
    %v247 = vunpack.c.l.b16 %v179
    %v248 = vpack.c.b16 %v241, %v240
    %v249 = vpack.c.b16 %v243, %v242
    %v250 = vpack.c.b16 %v245, %v244
    %v251 = vpack.c.b16 %v247, %v246
    %vm252 = vcmask 523264
    %v254 = vsel %vm252, %v248, 0
    %v257 = vsel %vm252, %v249, 0
    %v260 = vsel %vm252, %v250, 0
    %v263 = vsel %vm252, %v251, 0
    %265 = vmatpush.bf16.msra.mxu0 0
    %266 = vmatpush.bf16.msra.mxu0 0
    %267 = vmatpush.bf16.msra.mxu0 0
    %268 = vmatpush.bf16.msra.mxu0 0
    %269 = vmatpush.bf16.msra.mxu0 %v183
    %270 = vmatpush.bf16.msra.mxu0 %v182
    %271 = vmatpush.bf16.msra.mxu0 %v181
    %272 = vmatpush.bf16.msra.mxu0 %v180
    %273 = vmatmul.bf16.gmra.mxu0 %v254
    %v274 = vpop.f32.mrf.mxu0
    %v275 = vadd.f32 %v195, %v274
    %v276 = vpop.f32.mrf.mxu0
    %v277 = vadd.f32 %v200, %v276
    %278 = vmatmul.bf16.gmra.mxu0 %v257
    %v279 = vpop.f32.mrf.mxu0
    %v280 = vadd.f32 %v205, %v279
    %v281 = vpop.f32.mrf.mxu0
    %v282 = vadd.f32 %v210, %v281
    %283 = vmatmul.bf16.gmra.mxu0 %v260
    %v284 = vpop.f32.mrf.mxu0
    %v285 = vadd.f32 %v215, %v284
    %v286 = vpop.f32.mrf.mxu0
    %v287 = vadd.f32 %v220, %v286
    %288 = vmatmul.bf16.gmra.mxu0 %v263
    %v289 = vpop.f32.mrf.mxu0
    %v290 = vadd.f32 %v225, %v289
    %v291 = vpop.f32.mrf.mxu0
    %v292 = vadd.f32 %v230, %v291
    %293 = vdwg.mxu0
    %v294 = vtanh.pop %v275
    %v295 = vtanh.pop %v277
    %v296 = vtanh.pop %v280
    %v297 = vtanh.pop %v282
    %v298 = vtanh.pop %v285
    %v299 = vtanh.pop %v287
    %v300 = vtanh.pop %v290
    %v301 = vtanh.pop %v292
    %v302 = vld [vmem:[%s5] sm:$0xff]
    %v303 = vld [vmem:[%s5 + $0x8] sm:$0xff]
    %v304 = vld [vmem:[%s5 + $0x10] sm:$0xff]
    %v305 = vld [vmem:[%s5 + $0x18] sm:$0xff]
    %v306 = vld [vmem:[%s5 + $0x20] sm:$0xff]
    %v307 = vld [vmem:[%s5 + $0x28] sm:$0xff]
    %v308 = vld [vmem:[%s5 + $0x30] sm:$0xff]
    %v309 = vld [vmem:[%s5 + $0x38] sm:$0xff]
    %311 = vset.pattern.permute.xlu0 0
    %312 = vperm.xlu0 %311, %v302
    %v313 = vpop.permute.xlu0 %312
    %316 = vset.pattern.permute.xlu0 0
    %317 = vperm.xlu0 %316, %v303
    %v318 = vpop.permute.xlu0 %317
    %321 = vset.pattern.permute.xlu0 0
    %322 = vperm.xlu0 %321, %v304
    %v323 = vpop.permute.xlu0 %322
    %326 = vset.pattern.permute.xlu0 0
    %327 = vperm.xlu0 %326, %v305
    %v328 = vpop.permute.xlu0 %327
    %331 = vset.pattern.permute.xlu0 0
    %332 = vperm.xlu0 %331, %v306
    %v333 = vpop.permute.xlu0 %332
    %336 = vset.pattern.permute.xlu0 0
    %337 = vperm.xlu0 %336, %v307
    %v338 = vpop.permute.xlu0 %337
    %341 = vset.pattern.permute.xlu0 0
    %342 = vperm.xlu0 %341, %v308
    %v343 = vpop.permute.xlu0 %342
    %346 = vset.pattern.permute.xlu0 0
    %347 = vperm.xlu0 %346, %v309
    %v348 = vpop.permute.xlu0 %347
    %v350 = vmul.f32 %v294, %v313
    %v351 = vmul.f32 %v295, %v318
    %v352 = vmul.f32 %v296, %v323
    %v353 = vmul.f32 %v297, %v328
    %v354 = vmul.f32 %v298, %v333
    %v355 = vmul.f32 %v299, %v338
    %v356 = vmul.f32 %v300, %v343
    %v357 = vmul.f32 %v301, %v348
    %v358 = vadd.f32 %v350, %v351
    %v359 = vadd.f32 %v358, %v352
    %v360 = vadd.f32 %v359, %v353
    %v361 = vadd.f32 %v360, %v354
    %v362 = vadd.f32 %v361, %v355
    %v363 = vadd.f32 %v362, %v356
    %v364 = vadd.f32 %v363, %v357
    %v365 = vrot.slane %v364, 4
    %v366 = vadd.f32 %v364, %v365
    %v367 = vrot.slane %v366, 2
    %v368 = vadd.f32 %v366, %v367
    %v369 = vrot.slane %v368, 1
    %v370 = vadd.f32 %v368, %v369
    %v371 = vld [vmem:[#allocation2] sm:$0x1]
    %373 = vset.pattern.permute.xlu0 0
    %374 = vperm.xlu0 %373, %v371
    %v375 = vpop.permute.xlu0 %374
    %v377 = vperm.slane %v375, 0
    %v378 = vadd.f32 %v370, %v377
    %379 = vst [vmem:[#allocation3] sm:$0x1] %v378
    // Predicated region
    $region30: #{tpu_custom_call.1} parent=1 // pred_check
      _
    $region31: #{tpu_custom_call.1} parent=1 // pred_check_branch
      %381 = sbr.rel (0) target = $region33
    $region32: #{tpu_custom_call.1} parent=1 // pred_region
      %383 = vsyncadd [#allocation4], 0
      %s385 = sshll.u32 [#allocation3], 4
      %s386 = int_to_ptr.vmem [resolvable:$true] %s385
      %s387 = sshll.u32 %s7, 4
      %s388 = int_to_ptr.hbm [resolvable:$true] %s387
      %390 = dma.vmem_to_hbm [thread:$0]  %s386, 16, %s388, [#allocation4]
    $region33: #{tpu_custom_call.1} parent=1 // pred_fallthru
      _
    // Predicated region
    $region34: #{tpu_custom_call.1} parent=1 // pred_check
      _
    $region35: #{tpu_custom_call.1} parent=1 // pred_check_branch
      %392 = sbr.rel (0) target = $region37
    $region36: #{tpu_custom_call.1} parent=1 // pred_region
      %394 = dma.done [#allocation4], 16
    $region37: #{tpu_custom_call.1} parent=1 // pred_fallthru
      _
    %395 = vsyncpa [#allocation4], 1

</llo_original>
